<compile_context>
chip_gen: v7x
topology: tpu7x:2x2x1
jax: 0.10.0
libtpu: 0.0.40
codegen_flags: <defaults>
</compile_context>

<pallas_src>
import functools

import jax
import jax.numpy as jnp
from jax.experimental import pallas as pl
from jax.experimental.pallas import tpu as pltpu


_LANES = 128
_DEFAULT_SUBLANE_TILE = 2048      # dense path: (2048, 128) f32 per row = 1 MiB/block
_DEFAULT_LANE_TILE = 65536        # ragged-N path: (rows, 65536) f32 block
_DEFAULT_MIN_PALLAS_ELEMS = 65536  # below this, XLA fusion beats kernel overhead


def _sigmoid_rows_kernel(w_ref, b_ref, s_ref, o_ref, *, in_rows, out_rows):
    """Compute sigmoid(w_r * x + b_r) for every parameter row r of one block.

    w_ref / b_ref : (out_rows, 1) scalars in SMEM.
    s_ref         : (in_rows, ...) score block (in_rows is 1 when the score row
                    is broadcast against the parameters, else == out_rows).
    o_ref         : (out_rows, ...) output block.
    """
    s_trail = (slice(None),) * (len(s_ref.shape) - 1)
    o_trail = (slice(None),) * (len(o_ref.shape) - 1)
    for r in range(out_rows):                       # static unroll (out_rows == 2)
        ri = r if in_rows == out_rows else 0
        x = s_ref[(slice(ri, ri + 1), *s_trail)]    # (1, ...) slab
        wn = -w_ref[r, 0]                           # scalar-unit negates (SMEM reads)
        bn = -b_ref[r, 0]
        # Literal PyTorch formula: 1 / (1 + exp(-(w*x + b))), exact divide.
        o_ref[(slice(r, r + 1), *o_trail)] = 1.0 / (1.0 + jnp.exp(wn * x + bn))


def _xla_forward(score, w, b):
    """Plain-JAX fallback (tiny or high-rank inputs): XLA fuses this optimally."""
    return 1.0 / (1.0 + jnp.exp(-(w * score + b)))


def prs_forward(score, w, b, *,
                sublane_tile=_DEFAULT_SUBLANE_TILE,
                lane_tile=_DEFAULT_LANE_TILE,
                min_pallas_elems=_DEFAULT_MIN_PALLAS_ELEMS):
    """PRS_model.forward: sigmoid(w * score + b) with w, b of shape (2, 1)."""
    score = jnp.asarray(score, jnp.float32)
    w = jnp.asarray(w, jnp.float32)
    b = jnp.asarray(b, jnp.float32)

    out_shape = jnp.broadcast_shapes(score.shape, w.shape)  # PyTorch broadcast rules
    out_rows = w.shape[0]                                    # 2

    # Small or >2-D inputs: pallas_call launch/DMA overhead dominates — let XLA fuse.
    if score.ndim > 2 or score.size < min_pallas_elems or out_shape[-1] < _LANES:
        return _xla_forward(score, w, b)

    # Canonical 2-D view of score WITHOUT materializing the row broadcast.
    score2d = score.reshape(1, -1) if score.ndim <= 1 else score
    in_rows, n = score2d.shape                               # in_rows is 1 or out_rows

    sublane_tile = max(8, (int(sublane_tile) // 8) * 8)
    lane_tile = max(_LANES, (int(lane_tile) // _LANES) * _LANES)

    kernel = functools.partial(_sigmoid_rows_kernel,
                               in_rows=in_rows, out_rows=out_rows)
    params = pltpu.CompilerParams(dimension_semantics=("parallel",))

    if n % _LANES == 0:
        # Lane/sublane-dense slab path: (rows, M, 128); row-major reshape is free.
        m = n // _LANES
        ts = m if m <= sublane_tile else sublane_tile        # full extent or 8k tile
        grid = (pl.cdiv(m, ts),)
        s3 = score2d.reshape(in_rows, m, _LANES)
        out = pl.pallas_call(
            kernel,
            out_shape=jax.ShapeDtypeStruct((out_rows, m, _LANES), jnp.float32),
            grid=grid,
            in_specs=[
                pl.BlockSpec(memory_space=pltpu.SMEM),                    # w (2,1)
                pl.BlockSpec(memory_space=pltpu.SMEM),                    # b (2,1)
                pl.BlockSpec((in_rows, ts, _LANES), lambda j: (0, j, 0)),  # score
            ],
            out_specs=pl.BlockSpec((out_rows, ts, _LANES), lambda j: (0, j, 0)),
            compiler_params=params,
        )(w, b, s3)
        out2d = out.reshape(out_rows, n)                      # free reshape
    else:
        # Ragged N: run directly on the 2-D layout (no pad / no output slice);
        # Pallas masks the overhanging last tile.
        tn = n if n <= lane_tile else lane_tile
        grid = (pl.cdiv(n, tn),)
        out2d = pl.pallas_call(
            kernel,
            out_shape=jax.ShapeDtypeStruct((out_rows, n), jnp.float32),
            grid=grid,
            in_specs=[
                pl.BlockSpec(memory_space=pltpu.SMEM),                    # w (2,1)
                pl.BlockSpec(memory_space=pltpu.SMEM),                    # b (2,1)
                pl.BlockSpec((in_rows, tn), lambda j: (0, j)),            # score
            ],
            out_specs=pl.BlockSpec((out_rows, tn), lambda j: (0, j)),
            compiler_params=params,
        )(w, b, score2d)

    return out2d.reshape(out_shape)


if __name__ == "__main__":
    key = jax.random.PRNGKey(0)
    k_w, k_b, k_s1, k_s2, k_s3, k_s4 = jax.random.split(key, 6)

    # Deterministic "randn"-style parameters, shapes from PRS_model.__init__.
    w = jax.random.normal(k_w, (2, 1), dtype=jnp.float32)
    b = jax.random.normal(k_b, (2, 1), dtype=jnp.float32)

    def ref_fn(s):
        return 1.0 / (1.0 + jnp.exp(-(w * s + b)))

    # (2, N) dense-slab path; small tile forces a multi-step grid at small size.
    s1 = jax.random.normal(k_s1, (2, 2048), dtype=jnp.float32)
    o1 = jax.block_until_ready(prs_forward(s1, w, b, sublane_tile=8,
                                           min_pallas_elems=0))
    assert o1.shape == (2, 2048)
    assert jnp.allclose(o1, ref_fn(s1), atol=1e-5, rtol=1e-5)

    # Broadcast row: score (N,) -> output (2, N); one HBM block feeds both rows.
    s2 = jax.random.normal(k_s2, (4096,), dtype=jnp.float32)
    o2 = jax.block_until_ready(prs_forward(s2, w, b, min_pallas_elems=0))
    assert o2.shape == (2, 4096)
    assert jnp.allclose(o2, ref_fn(s2), atol=1e-5, rtol=1e-5)

    # Ragged N (not a multiple of 128): raw 2-D path, Pallas masks the tail tile.
    s3 = jax.random.normal(k_s3, (2, 2000), dtype=jnp.float32)
    o3 = jax.block_until_ready(prs_forward(s3, w, b, lane_tile=1024,
                                           min_pallas_elems=0))
    assert o3.shape == (2, 2000)
    assert jnp.allclose(o3, ref_fn(s3), atol=1e-5, rtol=1e-5)

    # Tiny input exercises the XLA-fusion fallback.
    s4 = jax.random.normal(k_s4, (2, 16), dtype=jnp.float32)
    o4 = jax.block_until_ready(prs_forward(s4, w, b))
    assert o4.shape == (2, 16)
    assert jnp.allclose(o4, ref_fn(s4), atol=1e-5, rtol=1e-5)

    print("KERNEL_OK")
</pallas_src>

<mosaic_0001>
module attributes {stable_mosaic.version = 11 : i64} {
  func.func @_sigmoid_rows_kernel(%arg0: i32, %arg1: memref<2x1xf32, #tpu.memory_space<smem>>, %arg2: memref<2x1xf32, #tpu.memory_space<smem>>, %arg3: memref<2x8x128xf32, #tpu.memory_space<vmem>>, %arg4: memref<2x8x128xf32, #tpu.memory_space<vmem>>) attributes {dimension_semantics = [#tpu.dimension_semantics<parallel>], iteration_bounds = array<i64: 2>, scalar_prefetch = 0 : i64, scratch_operands = 0 : i64, tpu.core_type = #tpu.core_type<tc>, window_params = [{transform_indices = @transform_0, window_bounds = array<i64: 2, 1>}, {transform_indices = @transform_1, window_bounds = array<i64: 2, 1>}, {transform_indices = @transform_2, window_bounds = array<i64: 2, 8, 128>}, {transform_indices = @transform_3, window_bounds = array<i64: 2, 8, 128>}]} {
    %c0 = arith.constant 0 : index
    %c0_0 = arith.constant 0 : index
    %c0_1 = arith.constant 0 : index
    %0 = vector.load %arg3[%c0, %c0_0, %c0_1] : memref<2x8x128xf32, #tpu.memory_space<vmem>>, vector<1x8x128xf32>
    %c0_2 = arith.constant 0 : index
    %c0_3 = arith.constant 0 : index
    %1 = memref.load %arg1[%c0_2, %c0_3] : memref<2x1xf32, #tpu.memory_space<smem>>
    %cst = arith.constant 0.000000e+00 : f32
    %2 = arith.subf %cst, %1 : f32
    %c0_4 = arith.constant 0 : index
    %c0_5 = arith.constant 0 : index
    %3 = memref.load %arg2[%c0_4, %c0_5] : memref<2x1xf32, #tpu.memory_space<smem>>
    %cst_6 = arith.constant 0.000000e+00 : f32
    %4 = arith.subf %cst_6, %3 : f32
    %5 = vector.broadcast %2 : f32 to vector<1x8x128xf32>
    %6 = arith.mulf %5, %0 : vector<1x8x128xf32>
    %7 = vector.broadcast %4 : f32 to vector<1x8x128xf32>
    %8 = arith.addf %6, %7 : vector<1x8x128xf32>
    %9 = math.exp %8 : vector<1x8x128xf32>
    %cst_7 = arith.constant 1.000000e+00 : f32
    %10 = vector.broadcast %cst_7 : f32 to vector<1x8x128xf32>
    %11 = arith.addf %10, %9 : vector<1x8x128xf32>
    %cst_8 = arith.constant 1.000000e+00 : f32
    %12 = vector.broadcast %cst_8 : f32 to vector<1x8x128xf32>
    %13 = arith.divf %12, %11 : vector<1x8x128xf32>
    %c0_9 = arith.constant 0 : index
    %c0_10 = arith.constant 0 : index
    %c0_11 = arith.constant 0 : index
    %14 = vector.load %arg4[%c0_9, %c0_10, %c0_11] : memref<2x8x128xf32, #tpu.memory_space<vmem>>, vector<1x8x128xf32>
    tpu.vector_store %arg4[%c0_9, %c0_10, %c0_11], %13 {strides = array<i32>} : memref<2x8x128xf32, #tpu.memory_space<vmem>>, vector<1x8x128xf32>,
    %c1 = arith.constant 1 : index
    %c0_12 = arith.constant 0 : index
    %c0_13 = arith.constant 0 : index
    %15 = vector.load %arg3[%c1, %c0_12, %c0_13] : memref<2x8x128xf32, #tpu.memory_space<vmem>>, vector<1x8x128xf32>
    %c1_14 = arith.constant 1 : index
    %c0_15 = arith.constant 0 : index
    %16 = memref.load %arg1[%c1_14, %c0_15] : memref<2x1xf32, #tpu.memory_space<smem>>
    %cst_16 = arith.constant 0.000000e+00 : f32
    %17 = arith.subf %cst_16, %16 : f32
    %c1_17 = arith.constant 1 : index
    %c0_18 = arith.constant 0 : index
    %18 = memref.load %arg2[%c1_17, %c0_18] : memref<2x1xf32, #tpu.memory_space<smem>>
    %cst_19 = arith.constant 0.000000e+00 : f32
    %19 = arith.subf %cst_19, %18 : f32
    %20 = vector.broadcast %17 : f32 to vector<1x8x128xf32>
    %21 = arith.mulf %20, %15 : vector<1x8x128xf32>
    %22 = vector.broadcast %19 : f32 to vector<1x8x128xf32>
    %23 = arith.addf %21, %22 : vector<1x8x128xf32>
    %24 = math.exp %23 : vector<1x8x128xf32>
    %cst_20 = arith.constant 1.000000e+00 : f32
    %25 = vector.broadcast %cst_20 : f32 to vector<1x8x128xf32>
    %26 = arith.addf %25, %24 : vector<1x8x128xf32>
    %cst_21 = arith.constant 1.000000e+00 : f32
    %27 = vector.broadcast %cst_21 : f32 to vector<1x8x128xf32>
    %28 = arith.divf %27, %26 : vector<1x8x128xf32>
    %c1_22 = arith.constant 1 : index
    %c0_23 = arith.constant 0 : index
    %c0_24 = arith.constant 0 : index
    %29 = vector.load %arg4[%c1_22, %c0_23, %c0_24] : memref<2x8x128xf32, #tpu.memory_space<vmem>>, vector<1x8x128xf32>
    tpu.vector_store %arg4[%c1_22, %c0_23, %c0_24], %28 {strides = array<i32>} : memref<2x8x128xf32, #tpu.memory_space<vmem>>, vector<1x8x128xf32>,
    return
  }
  func.func @transform_0(%arg0: i32) -> (i32, i32) {
    %c0_i32 = arith.constant 0 : i32
    %c0_i32_0 = arith.constant 0 : i32
    %c0_i32_1 = arith.constant 0 : i32
    return %c0_i32, %c0_i32_0 : i32, i32
  }
  func.func @transform_1(%arg0: i32) -> (i32, i32) {
    %c0_i32 = arith.constant 0 : i32
    %c0_i32_0 = arith.constant 0 : i32
    %c0_i32_1 = arith.constant 0 : i32
    return %c0_i32, %c0_i32_0 : i32, i32
  }
  func.func @transform_2(%arg0: i32) -> (i32, i32, i32) {
    %c0_i32 = arith.constant 0 : i32
    %c0_i32_0 = arith.constant 0 : i32
    %c0_i32_1 = arith.constant 0 : i32
    return %c0_i32, %arg0, %c0_i32_0 : i32, i32, i32
  }
  func.func @transform_3(%arg0: i32) -> (i32, i32, i32) {
    %c0_i32 = arith.constant 0 : i32
    %c0_i32_0 = arith.constant 0 : i32
    %c0_i32_1 = arith.constant 0 : i32
    return %c0_i32, %arg0, %c0_i32_0 : i32, i32, i32
  }
}

</mosaic_0001>

<llo_original>
// kernel: tpu_custom_call.1
$region0: #{tpu_custom_call.1}
  #allocation0 [shape = 'u32[]', space=smem, size = 0x4, offset = 0x4, fixed_abs, tag = 'smem constant byte address 0x4 - core index']
  #allocation1 [shape = 'u32[144,128]{1,0:T(1,128)}', space=vmem, size = 0x12000, scoped, tag = 'internal scratch']
  %s0 = inlined_call_operand.vmem [shape: f32[2,1], index: 0, kind: input, shape index: {}]
  %s1 = inlined_call_operand.vmem [shape: f32[2,1], index: 1, kind: input, shape index: {}]
  %s2 = inlined_call_operand.hbm [shape: f32[2,16,128], index: 2, kind: input, shape index: {}]
  %s3 = inlined_call_operand.hbm [shape: f32[2,16,128], index: 3, kind: output, shape index: {}]
  %s4 = sld [smem:[#allocation0]]
  $region57: #{tpu_custom_call.1} parent=0
    _
  %s6 = ssub.s32 1, %s4
  %s7 = scalar_select 0, %s6, %s4
  $region1: #{tpu_custom_call.1} parent=0
    #allocation2 [shape = 'u8[1024]{0}', space=smem, size = 0x400, scoped, tag = 'input window, operand 0, single buffered']
    #allocation3 [shape = 's32[2]{0}', space=sflag, size = 0x8, scoped, tag = 'scoped memory for tpu_custom_call.1']
    #allocation4 [shape = 's32[2]{0}', space=sflag, size = 0x8, scoped, tag = 'scoped memory for tpu_custom_call.1']
    #allocation5 [shape = 's32[2]{0}', space=sflag, size = 0x8, scoped, tag = 'scoped memory for tpu_custom_call.1']
    #allocation6 [shape = 'u8[1024]{0}', space=smem, size = 0x400, scoped, tag = 'input window, operand 1, single buffered']
    #allocation7 [shape = 's32[1]{0}', space=sflag, size = 0x4, scoped, tag = 'scoped memory for tpu_custom_call.1']
    #allocation8 [shape = 'u8[16384]{0}', space=vmem, size = 0x4000, scoped, tag = 'input window, operand 2']
    #allocation9 [shape = 'u8[16384]{0}', space=vmem, size = 0x4000, scoped, tag = 'output window, operand 0']
    %8 = vsyncpa [#allocation5], 0
    %9 = vsyncpa [#allocation7], 0
    %10 = vsyncpa [#allocation3], 0
    %s11 = scalar_lea.sflag [#allocation3], 1
    %12 = vsyncpa %s11, 0
    %13 = vsyncpa [#allocation4], 0
    %s14 = scalar_lea.sflag [#allocation4], 1
    %15 = vsyncpa %s14, 0
    loop: start=0, step=1, limit=4
    $region2: #{tpu_custom_call.1} parent=1 // loop_pre_header
      _
    $region3: #{tpu_custom_call.1} parent=1 // loop_header
      %s17 = sphi 0, %s21
      %p18 = scmp.ge.s32.totalorder %s17, 4
      %s25 = sphi 0, %s25
      %s27 = sphi 0, %s25
      %s28 = sphi 0, %s27
      %s42 = sphi 0, %s28
      %s46 = sphi 0, %s46
      %s48 = sphi 0, %s46
      %s49 = sphi 0, %s48
      %s63 = sphi 0, %s49
      %s69 = sphi 0, %s71
      %s72 = sphi 0, %s69
      %s73 = sphi 0, %s72
      %s89 = sphi 0, %s73
      %s95 = sphi 0, %s97
      %s98 = sphi 0, %s95
      %s99 = sphi 0, %s98
      %s115 = sphi 0, %s99
    $region4: #{tpu_custom_call.1} parent=1 // loop_header_branch
      %20 = sbr.rel (%p18) target = $region8
    $region5: #{tpu_custom_call.1} parent=1 // loop_body
      %s22 = ssub.s32 %s17, 1
      %s23 = ssub.s32 %s17, 2
      %s24 = sadd.s32 %s17, 1
      %s26 = sadd.s32 %s25, 1
      %p29 = scmp.eq.s32.totalorder %s17, 1
      %p30 = scmp.ne.s32.totalorder %s25, %s27
      %p31 = scmp.eq.s32.totalorder %s17, 0
      %p32 = por %p30, %p31
      %p33 = scmp.ne.s32.totalorder %s25, %s27
      %p34 = scmp.eq.s32.totalorder %s22, 1
      %p35 = por %p33, %p34
      %p36 = scmp.ne.s32.totalorder %s27, %s28
      %p37 = scmp.eq.s32.totalorder %s22, 0
      %p38 = por %p36, %p37
      %p39 = scmp.ne.s32.totalorder %s27, %s28
      %p40 = scmp.eq.s32.totalorder %s23, 1
      %p41 = por %p39, %p40
      %p43 = scmp.ne.s32.totalorder %s28, %s42
      %p44 = scmp.eq.s32.totalorder %s23, 0
      %p45 = por %p43, %p44
      %s47 = sadd.s32 %s46, 1
      %p50 = scmp.eq.s32.totalorder %s17, 1
      %p51 = scmp.ne.s32.totalorder %s46, %s48
      %p52 = scmp.eq.s32.totalorder %s17, 0
      %p53 = por %p51, %p52
      %p54 = scmp.ne.s32.totalorder %s46, %s48
      %p55 = scmp.eq.s32.totalorder %s22, 1
      %p56 = por %p54, %p55
      %p57 = scmp.ne.s32.totalorder %s48, %s49
      %p58 = scmp.eq.s32.totalorder %s22, 0
      %p59 = por %p57, %p58
      %p60 = scmp.ne.s32.totalorder %s48, %s49
      %p61 = scmp.eq.s32.totalorder %s23, 1
      %p62 = por %p60, %p61
      %p64 = scmp.ne.s32.totalorder %s49, %s63
      %p65 = scmp.eq.s32.totalorder %s23, 0
      %p66 = por %p64, %p65
      %s67 = ssub.s32 %s17, %s24
      %p68 = scmp.eq.s32.totalorder %s67, 0
      %s70 = sadd.s32 %s69, 1
      %s71 = scalar_select %p68, %s69, %s70
      %p74 = pneg %p68
      %p75 = scmp.eq.s32.totalorder %s17, 1
      %p76 = por %p74, %p75
      %p77 = scmp.ne.s32.totalorder %s69, %s72
      %p78 = scmp.eq.s32.totalorder %s17, 0
      %p79 = por %p77, %p78
      %p80 = scmp.ne.s32.totalorder %s69, %s72
      %p81 = scmp.eq.s32.totalorder %s22, 1
      %p82 = por %p80, %p81
      %p83 = scmp.ne.s32.totalorder %s72, %s73
      %p84 = scmp.eq.s32.totalorder %s22, 0
      %p85 = por %p83, %p84
      %p86 = scmp.ne.s32.totalorder %s72, %s73
      %p87 = scmp.eq.s32.totalorder %s23, 1
      %p88 = por %p86, %p87
      %p90 = scmp.ne.s32.totalorder %s73, %s89
      %p91 = scmp.eq.s32.totalorder %s23, 0
      %p92 = por %p90, %p91
      %s93 = ssub.s32 %s17, %s24
      %p94 = scmp.eq.s32.totalorder %s93, 0
      %s96 = sadd.s32 %s95, 1
      %s97 = scalar_select %p94, %s95, %s96
      %p100 = pneg %p94
      %p101 = scmp.eq.s32.totalorder %s17, 1
      %p102 = por %p100, %p101
      %p103 = scmp.ne.s32.totalorder %s95, %s98
      %p104 = scmp.eq.s32.totalorder %s17, 0
      %p105 = por %p103, %p104
      %p106 = scmp.ne.s32.totalorder %s95, %s98
      %p107 = scmp.eq.s32.totalorder %s22, 1
      %p108 = por %p106, %p107
      %p109 = scmp.ne.s32.totalorder %s98, %s99
      %p110 = scmp.eq.s32.totalorder %s22, 0
      %p111 = por %p109, %p110
      %p112 = scmp.ne.s32.totalorder %s98, %s99
      %p113 = scmp.eq.s32.totalorder %s23, 1
      %p114 = por %p112, %p113
      %p116 = scmp.ne.s32.totalorder %s99, %s115
      %p117 = scmp.eq.s32.totalorder %s23, 0
      %p118 = por %p116, %p117
      %p119 = scmp.le.s32.totalorder 1, %s17
      %p120 = scmp.lt.s32.totalorder %s17, 3
      %p121 = pnand %p119, %p120
      %p122 = pneg %p121
      // Predicated region
      $region9: #{tpu_custom_call.1} parent=5 // pred_check
        _
      $region10: #{tpu_custom_call.1} parent=5 // pred_check_branch
        %124 = sbr.rel (%p121) target = $region12
      $region11: #{tpu_custom_call.1} parent=5 // pred_region
        %s125 = ssub.s32 %s17, 1
        // Predicated region
        $region13: #{tpu_custom_call.1} parent=11 // pred_check
          %p126 = pneg %p38
        $region14: #{tpu_custom_call.1} parent=11 // pred_check_branch
          %128 = sbr.rel (%p126) target = $region16
        $region15: #{tpu_custom_call.1} parent=11 // pred_region
          %s130 = ssub.s32 32, 32
          %131 = vsyncadd [#allocation5], %s130
          %s133 = sshll.u32 %s0, 4
          %s134 = int_to_ptr.vmem [resolvable:$true] %s133
          %136 = dma.vmem_to_smem %s134, 32, [#allocation2], [#allocation5]
        $region16: #{tpu_custom_call.1} parent=11 // pred_fallthru
          _
        // Predicated region
        $region17: #{tpu_custom_call.1} parent=11 // pred_check
          %p137 = pneg %p59
        $region18: #{tpu_custom_call.1} parent=11 // pred_check_branch
          %139 = sbr.rel (%p137) target = $region20
        $region19: #{tpu_custom_call.1} parent=11 // pred_region
          %s141 = ssub.s32 32, 32
          %142 = vsyncadd [#allocation7], %s141
          %s144 = sshll.u32 %s1, 4
          %s145 = int_to_ptr.vmem [resolvable:$true] %s144
          %147 = dma.vmem_to_smem %s145, 32, [#allocation6], [#allocation7]
        $region20: #{tpu_custom_call.1} parent=11 // pred_fallthru
          _
      $region12: #{tpu_custom_call.1} parent=5 // pred_fallthru
        _
      %p148 = scmp.lt.s32.totalorder %s17, 2
      // Predicated region
      $region21: #{tpu_custom_call.1} parent=5 // pred_check
        %p149 = pneg %p148
      $region22: #{tpu_custom_call.1} parent=5 // pred_check_branch
        %151 = sbr.rel (%p149) target = $region24
      $region23: #{tpu_custom_call.1} parent=5 // pred_region
        // Predicated region
        $region25: #{tpu_custom_call.1} parent=23 // pred_check
          %p152 = pneg %p79
        $region26: #{tpu_custom_call.1} parent=23 // pred_check_branch
          %154 = sbr.rel (%p152) target = $region28
        $region27: #{tpu_custom_call.1} parent=23 // pred_region
          %s155 = sand.u32 %s69, 1
          %s156 = scalar_lea.sflag [#allocation3], %s155
          %s157 = sand.u32 %s69, 1
          %s158 = smul.addr %s157, 16
          %s159 = scalar_lea.vmem [#allocation8], %s158
          %s161 = ssub.s32 256, 256
          %162 = vsyncadd %s156, %s161
          %s163 = smul.addr %s17, 128
          %s164 = scalar_lea.hbm %s2, %s163
          %s165 = sshll.u32 %s159, 4
          %s166 = int_to_ptr.vmem [resolvable:$true] %s165
          %171 = dma.hbm_to_vmem [thread:$0]  %s164, 256, %s166, %s156, 256, 128, 8
        $region28: #{tpu_custom_call.1} parent=23 // pred_fallthru
          _
      $region24: #{tpu_custom_call.1} parent=5 // pred_fallthru
        _
      %p172 = scmp.le.s32.totalorder 1, %s17
      %p173 = scmp.lt.s32.totalorder %s17, 3
      %p174 = pnand %p172, %p173
      %p175 = pneg %p174
      // Predicated region
      $region29: #{tpu_custom_call.1} parent=5 // pred_check
        _
      $region30: #{tpu_custom_call.1} parent=5 // pred_check_branch
        %177 = sbr.rel (%p174) target = $region32
      $region31: #{tpu_custom_call.1} parent=5 // pred_region
        %s178 = ssub.s32 %s17, 1
        // Predicated region
        $region33: #{tpu_custom_call.1} parent=31 // pred_check
          %p179 = pneg %p38
        $region34: #{tpu_custom_call.1} parent=31 // pred_check_branch
          %181 = sbr.rel (%p179) target = $region36
        $region35: #{tpu_custom_call.1} parent=31 // pred_region
          %182 = dma.done [#allocation5], 32
        $region36: #{tpu_custom_call.1} parent=31 // pred_fallthru
          _
        // Predicated region
        $region37: #{tpu_custom_call.1} parent=31 // pred_check
          %p183 = pneg %p59
        $region38: #{tpu_custom_call.1} parent=31 // pred_check_branch
          %185 = sbr.rel (%p183) target = $region40
        $region39: #{tpu_custom_call.1} parent=31 // pred_region
          %186 = dma.done [#allocation7], 32
        $region40: #{tpu_custom_call.1} parent=31 // pred_fallthru
          _
        %s187 = sand.u32 %s72, 1
        %s188 = scalar_lea.sflag [#allocation3], %s187
        %s189 = sand.u32 %s72, 1
        %s190 = smul.addr %s189, 16
        %s191 = scalar_lea.vmem [#allocation8], %s190
        // Predicated region
        $region41: #{tpu_custom_call.1} parent=31 // pred_check
          %p192 = pneg %p85
        $region42: #{tpu_custom_call.1} parent=31 // pred_check_branch
          %194 = sbr.rel (%p192) target = $region44
        $region43: #{tpu_custom_call.1} parent=31 // pred_region
          %195 = dma.done %s188, 256
        $region44: #{tpu_custom_call.1} parent=31 // pred_fallthru
          _
        %196 = sfence
        %p197 = pneg %p38
        %p198 = pneg %p35
        %p199 = pneg %p59
        %p200 = pneg %p56
        %s201 = sand.u32 %s72, 1
        %s202 = scalar_lea.sflag [#allocation3], %s201
        %s203 = sand.u32 %s72, 1
        %s204 = smul.addr %s203, 16
        %s205 = scalar_lea.vmem [#allocation8], %s204
        %p206 = pneg %p85
        %p207 = pneg %p82
        %p208 = pneg %p111
        %p209 = pneg %p108
        %s210 = sand.u32 %s98, 1
        %s211 = scalar_lea.sflag [#allocation4], %s210
        %s212 = sand.u32 %s98, 1
        %s213 = smul.addr %s212, 16
        %s214 = scalar_lea.vmem [#allocation9], %s213
        %v215 = vld [vmem:[%s191] sm:$0xff]
        %s216 = sld [smem:[#allocation2]]
        %s217 = ssub.f32 0.0, %s216
        %s218 = sld [smem:[#allocation6]]
        %s219 = ssub.f32 0.0, %s218
        %v220 = vstv %s217
        %v221 = vmul.f32 %v220, %v215
        %v222 = vstv %s219
        %v223 = vadd.f32 %v221, %v222
        %v224 = vmul.f32 %v223, 1.442695
        %v225 = vpow.pop %v224
        %v226 = vadd.f32 %v225, 1.0
        %v227 = vrcp.pop %v226
        %v228 = vmul.f32 1.0, %v227
        %229 = vst [vmem:[%s214] sm:$0xff] %v228
        %s230 = scalar_lea.vmem %s191, 8 [#allocation8]
        %v231 = vld [vmem:[%s230] sm:$0xff]
        %s232 = sld [smem:[#allocation2 + $0x80]]
        %s233 = ssub.f32 0.0, %s232
        %s234 = sld [smem:[#allocation6 + $0x80]]
        %s235 = ssub.f32 0.0, %s234
        %v236 = vstv %s233
        %v237 = vmul.f32 %v236, %v231
        %v238 = vstv %s235
        %v239 = vadd.f32 %v237, %v238
        %v240 = vmul.f32 %v239, 1.442695
        %v241 = vpow.pop %v240
        %v242 = vadd.f32 %v241, 1.0
        %v243 = vrcp.pop %v242
        %v244 = vmul.f32 1.0, %v243
        %s245 = scalar_lea.vmem %s214, 8 [#allocation9]
        %246 = vst [vmem:[%s245] sm:$0xff] %v244
        %s247 = sand.u32 %s98, 1
        %s248 = scalar_lea.sflag [#allocation4], %s247
        %s249 = sand.u32 %s98, 1
        %s250 = smul.addr %s249, 16
        %s251 = scalar_lea.vmem [#allocation9], %s250
        // Predicated region
        $region45: #{tpu_custom_call.1} parent=31 // pred_check
          %p252 = pneg %p108
        $region46: #{tpu_custom_call.1} parent=31 // pred_check_branch
          %254 = sbr.rel (%p252) target = $region48
        $region47: #{tpu_custom_call.1} parent=31 // pred_region
          %s256 = ssub.s32 256, 256
          %257 = vsyncadd %s248, %s256
          %s258 = smul.addr %s22, 128
          %s259 = scalar_lea.hbm %s3, %s258
          %s260 = sshll.u32 %s251, 4
          %s261 = int_to_ptr.vmem [resolvable:$true] %s260
          %266 = dma.vmem_to_hbm [thread:$0]  %s261, 256, %s259, %s248, 128, 256, 8
        $region48: #{tpu_custom_call.1} parent=31 // pred_fallthru
          _
      $region32: #{tpu_custom_call.1} parent=5 // pred_fallthru
        _
      %p267 = scmp.le.s32.totalorder 2, %s17
      // Predicated region
      $region49: #{tpu_custom_call.1} parent=5 // pred_check
        %p268 = pneg %p267
      $region50: #{tpu_custom_call.1} parent=5 // pred_check_branch
        %270 = sbr.rel (%p268) target = $region52
      $region51: #{tpu_custom_call.1} parent=5 // pred_region
        %s271 = ssub.s32 %s17, 2
        // Predicated region
        $region53: #{tpu_custom_call.1} parent=51 // pred_check
          %p272 = pneg %p114
        $region54: #{tpu_custom_call.1} parent=51 // pred_check_branch
          %274 = sbr.rel (%p272) target = $region56
        $region55: #{tpu_custom_call.1} parent=51 // pred_region
          %s275 = sand.u32 %s99, 1
          %s276 = scalar_lea.sflag [#allocation4], %s275
          %s277 = sand.u32 %s99, 1
          %s278 = smul.addr %s277, 16
          %s279 = scalar_lea.vmem [#allocation9], %s278
          %280 = dma.done %s276, 256
        $region56: #{tpu_custom_call.1} parent=51 // pred_fallthru
          _
      $region52: #{tpu_custom_call.1} parent=5 // pred_fallthru
        _
    $region6: #{tpu_custom_call.1} parent=1 // loop_footer
      %s21 = sadd.s32 1, %s17
    $region7: #{tpu_custom_call.1} parent=1 // loop_footer_branch
      %16 = sbr.rel target = $region3
    $region8: #{tpu_custom_call.1} parent=1 // loop_exit
      _
    %281 = vsyncpa [#allocation3], 1
    %s282 = scalar_lea.sflag [#allocation3], 1
    %283 = vsyncpa %s282, 1
    %284 = vsyncpa [#allocation4], 1
    %s285 = scalar_lea.sflag [#allocation4], 1
    %286 = vsyncpa %s285, 1
    %287 = vsyncpa [#allocation5], 1
    %s288 = scalar_lea.sflag [#allocation5], 1
    %289 = vsyncpa %s288, 1
    %290 = vsyncpa [#allocation7], 1

</llo_original>
